<compile_context>
chip_gen: v7x
topology: tpu7x:2x2x1
jax: 0.10.0
libtpu: 0.0.40
codegen_flags: <defaults>
</compile_context>

<pallas_src>
import jax
import jax.numpy as jnp
from jax.experimental import pallas as pl
from jax.experimental.pallas import tpu as pltpu


def _round_up(x, m):
    return ((x + m - 1) // m) * m


# --------------------------------------------------------------------------
# Kernels
# --------------------------------------------------------------------------
def _distmult_onehot_kernel(rel_ref, r_ref, h_ref, t_ref, o_ref):
    """rel_ref: (R, D) VMEM-resident; r_ref: (TB, 1) int32; h/t_ref: (TB, D);
    o_ref: (TB, 1) f32."""
    tb, d = h_ref.shape
    num_rel = rel_ref.shape[0]

    h = h_ref[...]
    t = t_ref[...]
    rel = rel_ref[...]
    idx = r_ref[...]                                              # (TB, 1) int32

    # In-kernel relation gather as a one-hot matmul on the (otherwise idle) MXU.
    onehot = (idx == jax.lax.broadcasted_iota(jnp.int32, (tb, num_rel), 1)
              ).astype(rel.dtype)                                 # (TB, R), exact 0/1

    if rel.dtype == jnp.float32:
        # Multi-pass f32 matmul: effectively exact row-select (not bit-exact).
        r_emb = jnp.dot(onehot, rel,
                        preferred_element_type=jnp.float32,
                        precision=jax.lax.Precision.HIGHEST)      # (TB, D) f32
    else:
        # Single-pass bf16 MXU: exact select of the (already bf16) rows.
        r_emb = jnp.dot(onehot, rel, preferred_element_type=rel.dtype)

    score = h * r_emb * t                                         # VPU, streaming dtype

    if score.dtype == jnp.float32:
        # Exact f32 cross-lane reduce on the XLU (no MXU rounding, no transpose).
        o_ref[...] = jnp.sum(score, axis=1, keepdims=True)
    else:
        # bf16 products, f32 accumulation on the MXU.
        ones_col = jnp.ones((d, 1), score.dtype)
        o_ref[...] = jnp.dot(score, ones_col,
                             preferred_element_type=jnp.float32)


def _distmult_pregather_kernel(h_ref, r_emb_ref, t_ref, o_ref):
    """Pre-gathered r_emb path (large relation tables): pure elementwise + reduce."""
    d = h_ref.shape[1]
    score = h_ref[...] * r_emb_ref[...] * t_ref[...]
    if score.dtype == jnp.float32:
        o_ref[...] = jnp.sum(score, axis=1, keepdims=True)
    else:
        o_ref[...] = jnp.dot(score, jnp.ones((d, 1), score.dtype),
                             preferred_element_type=jnp.float32)


# --------------------------------------------------------------------------
# Wrapper
# --------------------------------------------------------------------------
def distmult_decoder(rel_emb, h, r, t, mode="tail-batch", *,
                     stream_dtype=None, tile_b=None,
                     onehot_max_relations=512, onehot_max_bytes=2 << 20,
                     vmem_budget_bytes=24 << 20):
    """DistMultDecoder.forward.

    rel_emb: (num_relations, D)
    h, t:    (B, D)
    r:       (B,) int relation indices
    mode:    'head-batch' / 'tail-batch'  (identical product, both supported)
    stream_dtype: optionally stream h/t/rel_emb narrower (jnp.bfloat16 halves
                  HBM traffic on this bandwidth-bound kernel); the reduction
                  always accumulates in f32.
    returns: (B,) f32
    """
    del mode  # h * (r * t) == h * r * t
    B, D = h.shape
    R = rel_emb.shape[0]

    if stream_dtype is not None:
        h = h.astype(stream_dtype)
    dt = h.dtype
    t = t.astype(dt)
    rel_emb = rel_emb.astype(dt)
    itemsize = jnp.dtype(dt).itemsize

    # Small relation tables: gather in-kernel (rel_emb resident in VMEM).
    # Large tables: pre-gather r_emb with XLA and stream it like h / t.
    use_onehot = (R <= onehot_max_relations) and (2 * R * D * itemsize <= onehot_max_bytes)
    n_stream = 2 if use_onehot else 3          # (tb, D) tensors streamed per step

    def _scratch_bytes(tb_):
        b = n_stream * 2 * tb_ * D * itemsize            # h, t (+ r_emb), double-buffered
        b += 2 * tb_ * 128 * 4                            # (tb, 1) f32 output (lane-padded)
        if use_onehot:
            b += 2 * tb_ * 128 * 4                        # (tb, 1) int32 ids (lane-padded)
            b += 2 * R * D * itemsize                     # VMEM-resident rel_emb buffers
        return b

    # --- batch-tile selection -------------------------------------------------
    if tile_b is None:
        target_stream_bytes = 4 << 20                     # ~4 MiB of streamed input / step
        tb = target_stream_bytes // max(1, n_stream * D * itemsize)
    else:
        tb = int(tile_b)
    tb = min(tb, _round_up(B, 8))                         # never exceed the batch
    if B >= 256:                                          # keep >= 2 tiles (v7x megacore)
        tb = min(tb, _round_up(-(-B // 2), 8))
    tb = max(8, _round_up(tb, 8))
    while tb > 8 and _scratch_bytes(tb) > vmem_budget_bytes:
        tb = max(8, _round_up(tb // 2, 8))
    # TODO(synk): for extremely large D a single (tb, D) row block may still
    # exceed the VMEM budget; D-tiling with an in-kernel accumulator would be
    # needed in that regime.

    n_tiles = -(-B // tb)
    vmem_limit = int(min(max(_scratch_bytes(tb) + (2 << 20), 16 << 20), 64 << 20))

    cost = pl.CostEstimate(
        flops=int(3 * B * D + (2 * B * R * D if use_onehot else 0)),
        transcendentals=0,
        bytes_accessed=int(n_stream * B * D * itemsize
                           + (R * D * itemsize if use_onehot else 0)
                           + B * 4 + B * 4),
    )
    cparams = pltpu.CompilerParams(dimension_semantics=("parallel",),
                                   vmem_limit_bytes=vmem_limit)

    if use_onehot:
        # Pad only the tiny relation-id vector so every block holds valid indices.
        Br = n_tiles * tb
        r_ids = r.astype(jnp.int32).reshape(-1)
        if Br != B:
            r_ids = jnp.pad(r_ids, (0, Br - B))
        r_ids = r_ids.reshape(Br, 1)

        out = pl.pallas_call(
            _distmult_onehot_kernel,
            out_shape=jax.ShapeDtypeStruct((B, 1), jnp.float32),
            grid_spec=pltpu.PrefetchScalarGridSpec(
                num_scalar_prefetch=0,
                grid=(n_tiles,),
                in_specs=[
                    pl.BlockSpec((R, D), lambda i: (0, 0)),    # rel_emb (constant block)
                    pl.BlockSpec((tb, 1), lambda i: (i, 0)),   # relation ids
                    pl.BlockSpec((tb, D), lambda i: (i, 0)),   # h
                    pl.BlockSpec((tb, D), lambda i: (i, 0)),   # t
                ],
                out_specs=pl.BlockSpec((tb, 1), lambda i: (i, 0)),
            ),
            compiler_params=cparams,
            cost_estimate=cost,
        )(rel_emb, r_ids, h, t)
    else:
        r_emb = rel_emb[r.astype(jnp.int32)]                   # XLA gather, exact
        out = pl.pallas_call(
            _distmult_pregather_kernel,
            out_shape=jax.ShapeDtypeStruct((B, 1), jnp.float32),
            grid_spec=pltpu.PrefetchScalarGridSpec(
                num_scalar_prefetch=0,
                grid=(n_tiles,),
                in_specs=[
                    pl.BlockSpec((tb, D), lambda i: (i, 0)),   # h
                    pl.BlockSpec((tb, D), lambda i: (i, 0)),   # r_emb
                    pl.BlockSpec((tb, D), lambda i: (i, 0)),   # t
                ],
                out_specs=pl.BlockSpec((tb, 1), lambda i: (i, 0)),
            ),
            compiler_params=cparams,
            cost_estimate=cost,
        )(h, r_emb, t)

    return out[:, 0]


def xavier_uniform(key, shape, dtype=jnp.float32):
    fan_in, fan_out = shape[0], shape[1]
    bound = (6.0 / (fan_in + fan_out)) ** 0.5
    return jax.random.uniform(key, shape, dtype, minval=-bound, maxval=bound)


if __name__ == "__main__":
    num_relations = 16
    hidden_dim = 128
    batch = 16

    key = jax.random.PRNGKey(0)
    k_rel, k_h, k_t, k_r = jax.random.split(key, 4)

    rel_emb = xavier_uniform(k_rel, (num_relations, hidden_dim))
    h = jax.random.normal(k_h, (batch, hidden_dim), jnp.float32)
    t = jax.random.normal(k_t, (batch, hidden_dim), jnp.float32)
    r = jax.random.randint(k_r, (batch,), 0, num_relations, jnp.int32)

    # Pure-JAX reference
    ref = jnp.sum(h * rel_emb[r] * t, axis=1)

    # Default (f32) path, both modes
    out_tail = jax.block_until_ready(distmult_decoder(rel_emb, h, r, t, "tail-batch"))
    out_head = jax.block_until_ready(distmult_decoder(rel_emb, h, r, t, "head-batch"))
    assert out_tail.shape == (batch,)
    assert jnp.allclose(out_tail, ref, atol=1e-3, rtol=1e-3)
    assert jnp.allclose(out_head, ref, atol=1e-3, rtol=1e-3)

    # Ragged batch: exercises the no-padding / partial-last-tile path.
    b2 = 10
    out_ragged = jax.block_until_ready(
        distmult_decoder(rel_emb, h[:b2], r[:b2], t[:b2], "tail-batch"))
    assert out_ragged.shape == (b2,)
    assert jnp.allclose(out_ragged, ref[:b2], atol=1e-3, rtol=1e-3)

    # bf16 streaming fast path (halves HBM traffic; f32 accumulation in-kernel).
    out_bf16 = jax.block_until_ready(
        distmult_decoder(rel_emb, h, r, t, "tail-batch", stream_dtype=jnp.bfloat16))
    assert jnp.allclose(out_bf16, ref, atol=0.25, rtol=0.1)

    # Large-relation-table fallback (pre-gathered r_emb streamed through kernel).
    out_pg = jax.block_until_ready(
        distmult_decoder(rel_emb, h, r, t, "tail-batch", onehot_max_relations=0))
    assert jnp.allclose(out_pg, ref, atol=1e-3, rtol=1e-3)

    # Explicit small tile override: exercises a multi-tile grid.
    out_tiles = jax.block_until_ready(
        distmult_decoder(rel_emb, h, r, t, "tail-batch", tile_b=8))
    assert jnp.allclose(out_tiles, ref, atol=1e-3, rtol=1e-3)

    print("KERNEL_OK")
</pallas_src>

<mosaic_0001>
module attributes {stable_mosaic.version = 11 : i64} {
  func.func @_distmult_onehot_kernel(%arg0: i32, %arg1: memref<16x128xf32, #tpu.memory_space<vmem>>, %arg2: memref<16x1xi32, #tpu.memory_space<vmem>>, %arg3: memref<16x128xf32, #tpu.memory_space<vmem>>, %arg4: memref<16x128xf32, #tpu.memory_space<vmem>>, %arg5: memref<16x1xf32, #tpu.memory_space<vmem>>) attributes {dimension_semantics = [#tpu.dimension_semantics<parallel>], iteration_bounds = array<i64: 1>, scalar_prefetch = 0 : i64, scratch_operands = 0 : i64, tpu.core_type = #tpu.core_type<tc>, window_params = [{pipeline_mode = #tpu.pipeline_mode<synchronous>, transform_indices = @transform_0, window_bounds = array<i64: 16, 128>}, {transform_indices = @transform_1, window_bounds = array<i64: 16, 1>}, {transform_indices = @transform_2, window_bounds = array<i64: 16, 128>}, {transform_indices = @transform_3, window_bounds = array<i64: 16, 128>}, {transform_indices = @transform_4, window_bounds = array<i64: 16, 1>}]} {
    %c0 = arith.constant 0 : index
    %c0_0 = arith.constant 0 : index
    %0 = vector.load %arg3[%c0, %c0_0] : memref<16x128xf32, #tpu.memory_space<vmem>>, vector<16x128xf32>
    %c0_1 = arith.constant 0 : index
    %c0_2 = arith.constant 0 : index
    %1 = vector.load %arg4[%c0_1, %c0_2] : memref<16x128xf32, #tpu.memory_space<vmem>>, vector<16x128xf32>
    %c0_3 = arith.constant 0 : index
    %c0_4 = arith.constant 0 : index
    %2 = vector.load %arg1[%c0_3, %c0_4] : memref<16x128xf32, #tpu.memory_space<vmem>>, vector<16x128xf32>
    %c0_5 = arith.constant 0 : index
    %c0_6 = arith.constant 0 : index
    %3 = vector.load %arg2[%c0_5, %c0_6] : memref<16x1xi32, #tpu.memory_space<vmem>>, vector<16x1xi32>
    %4 = tpu.iota {dimensions = array<i32: 1>} : vector<16x16xi32>
    %5 = vector.broadcast %3 : vector<16x1xi32> to vector<16x16xi32>
    %6 = arith.cmpi eq, %5, %4 : vector<16x16xi32>
    %7 = arith.extui %6 : vector<16x16xi1> to vector<16x16xi32>
    %8 = arith.sitofp %7 : vector<16x16xi32> to vector<16x16xf32>
    %cst = arith.constant dense<0.000000e+00> : vector<16x128xf32>
    %9 = tpu.matmul %8, %2, %cst {dimension_numbers = #tpu.dot_dimension_numbers<[1], [0], [0], [1], [0, 0, 1, 1], [], []>, precision = #tpu.contract_precision<fp32>} : vector<16x16xf32>, vector<16x128xf32>, vector<16x128xf32> -> vector<16x128xf32>
    %10 = arith.mulf %0, %9 : vector<16x128xf32>
    %11 = arith.mulf %10, %1 : vector<16x128xf32>
    %cst_7 = arith.constant dense<0.000000e+00> : vector<16xf32>
    %12 = vector.multi_reduction <add>, %11, %cst_7 [1] : vector<16x128xf32> to vector<16xf32>
    %13 = vector.shape_cast %12 : vector<16xf32> to vector<16x1xf32>
    %c0_8 = arith.constant 0 : index
    %c0_9 = arith.constant 0 : index
    %14 = vector.load %arg5[%c0_8, %c0_9] : memref<16x1xf32, #tpu.memory_space<vmem>>, vector<16x1xf32>
    tpu.vector_store %arg5[%c0_8, %c0_9], %13 {strides = array<i32>} : memref<16x1xf32, #tpu.memory_space<vmem>>, vector<16x1xf32>,
    return
  }
  func.func @transform_0(%arg0: i32) -> (i32, i32) {
    %c0_i32 = arith.constant 0 : i32
    %c0_i32_0 = arith.constant 0 : i32
    %c0_i32_1 = arith.constant 0 : i32
    return %c0_i32, %c0_i32_0 : i32, i32
  }
  func.func @transform_1(%arg0: i32) -> (i32, i32) {
    %c0_i32 = arith.constant 0 : i32
    %c0_i32_0 = arith.constant 0 : i32
    return %arg0, %c0_i32 : i32, i32
  }
  func.func @transform_2(%arg0: i32) -> (i32, i32) {
    %c0_i32 = arith.constant 0 : i32
    %c0_i32_0 = arith.constant 0 : i32
    return %arg0, %c0_i32 : i32, i32
  }
  func.func @transform_3(%arg0: i32) -> (i32, i32) {
    %c0_i32 = arith.constant 0 : i32
    %c0_i32_0 = arith.constant 0 : i32
    return %arg0, %c0_i32 : i32, i32
  }
  func.func @transform_4(%arg0: i32) -> (i32, i32) {
    %c0_i32 = arith.constant 0 : i32
    %c0_i32_0 = arith.constant 0 : i32
    return %arg0, %c0_i32 : i32, i32
  }
}

</mosaic_0001>

<llo_original>
// kernel: tpu_custom_call.1
$region0: #{tpu_custom_call.1}
  #allocation0 [shape = 'u32[]', space=smem, size = 0x4, offset = 0x4, fixed_abs, tag = 'smem constant byte address 0x4 - core index']
  #allocation1 [shape = 'u32[144,128]{1,0:T(1,128)}', space=vmem, size = 0x12000, scoped, tag = 'internal scratch']
  %s0 = inlined_call_operand.vmem [shape: f32[16,128], index: 0, kind: input, shape index: {}]
  %s1 = inlined_call_operand.vmem [shape: s32[16,1], index: 1, kind: input, shape index: {}]
  %s2 = inlined_call_operand.hbm [shape: f32[16,128], index: 2, kind: input, shape index: {}]
  %s3 = inlined_call_operand.hbm [shape: f32[16,128], index: 3, kind: input, shape index: {}]
  %s4 = inlined_call_operand.vmem [shape: f32[16,1], index: 4, kind: output, shape index: {}]
  %s5 = sld [smem:[#allocation0]]
  $region34: #{tpu_custom_call.1} parent=0
    _
  %s7 = ssub.s32 1, %s5
  %s8 = scalar_select 0, %s7, %s5
  $region1: #{tpu_custom_call.1} parent=0
    #allocation2 [shape = 'u8[8192]{0}', space=vmem, size = 0x2000, scoped, tag = 'input window, operand 2, single buffered']
    #allocation3 [shape = 's32[1]{0}', space=sflag, size = 0x4, scoped, tag = 'scoped memory for tpu_custom_call.1']
    #allocation4 [shape = 'u8[8192]{0}', space=vmem, size = 0x2000, scoped, tag = 'input window, operand 3, single buffered']
    #allocation5 [shape = 's32[1]{0}', space=sflag, size = 0x4, scoped, tag = 'scoped memory for tpu_custom_call.1']
    %9 = vsyncpa [#allocation3], 0
    %10 = vsyncpa [#allocation5], 0
    // Predicated region
    $region2: #{tpu_custom_call.1} parent=1 // pred_check
      _
    $region3: #{tpu_custom_call.1} parent=1 // pred_check_branch
      %12 = sbr.rel (0) target = $region5
    $region4: #{tpu_custom_call.1} parent=1 // pred_region
      _
    $region5: #{tpu_custom_call.1} parent=1 // pred_fallthru
      _
    // Predicated region
    $region6: #{tpu_custom_call.1} parent=1 // pred_check
      _
    $region7: #{tpu_custom_call.1} parent=1 // pred_check_branch
      %14 = sbr.rel (0) target = $region9
    $region8: #{tpu_custom_call.1} parent=1 // pred_region
      _
    $region9: #{tpu_custom_call.1} parent=1 // pred_fallthru
      _
    // Predicated region
    $region10: #{tpu_custom_call.1} parent=1 // pred_check
      _
    $region11: #{tpu_custom_call.1} parent=1 // pred_check_branch
      %16 = sbr.rel (0) target = $region13
    $region12: #{tpu_custom_call.1} parent=1 // pred_region
      %s18 = ssub.s32 256, 256
      %19 = vsyncadd [#allocation3], %s18
      %s20 = sshll.u32 [#allocation2], 4
      %s21 = int_to_ptr.vmem [resolvable:$true] %s20
      %26 = dma.hbm_to_vmem [thread:$0]  %s2, 256, %s21, [#allocation3], 128, 128, 8
    $region13: #{tpu_custom_call.1} parent=1 // pred_fallthru
      _
    // Predicated region
    $region14: #{tpu_custom_call.1} parent=1 // pred_check
      _
    $region15: #{tpu_custom_call.1} parent=1 // pred_check_branch
      %28 = sbr.rel (0) target = $region17
    $region16: #{tpu_custom_call.1} parent=1 // pred_region
      %s30 = ssub.s32 256, 256
      %31 = vsyncadd [#allocation5], %s30
      %s32 = sshll.u32 [#allocation4], 4
      %s33 = int_to_ptr.vmem [resolvable:$true] %s32
      %38 = dma.hbm_to_vmem [thread:$0]  %s3, 256, %s33, [#allocation5], 128, 128, 8
    $region17: #{tpu_custom_call.1} parent=1 // pred_fallthru
      _
    // Predicated region
    $region18: #{tpu_custom_call.1} parent=1 // pred_check
      _
    $region19: #{tpu_custom_call.1} parent=1 // pred_check_branch
      %40 = sbr.rel (0) target = $region21
    $region20: #{tpu_custom_call.1} parent=1 // pred_region
      %41 = dma.done [#allocation3], 256
    $region21: #{tpu_custom_call.1} parent=1 // pred_fallthru
      _
    // Predicated region
    $region22: #{tpu_custom_call.1} parent=1 // pred_check
      _
    $region23: #{tpu_custom_call.1} parent=1 // pred_check_branch
      %43 = sbr.rel (0) target = $region25
    $region24: #{tpu_custom_call.1} parent=1 // pred_region
      %44 = dma.done [#allocation5], 256
    $region25: #{tpu_custom_call.1} parent=1 // pred_fallthru
      _
    %v45 = vld [vmem:[#allocation2] sm:$0xff]
    %v46 = vld [vmem:[#allocation2 + $0x8] sm:$0xff]
    %v47 = vld [vmem:[#allocation4] sm:$0xff]
    %v48 = vld [vmem:[#allocation4 + $0x8] sm:$0xff]
    %v49 = vld [vmem:[%s0] sm:$0xff]
    %v50 = vld [vmem:[%s0 + $0x8] sm:$0xff]
    %v51 = vld [vmem:[%s1] sm:$0xff]
    %v52 = vld [vmem:[%s1 + $0x8] sm:$0xff]
    %v53 = vlaneseq
    %v54 = vand.u32 %v53, 127
    %55 = vset.pattern.permute.xlu0 0
    %56 = vperm.xlu0 %55, %v51
    %v57 = vpop.permute.xlu0 %56
    %58 = vset.pattern.permute.xlu0 0
    %59 = vperm.xlu0 %58, %v52
    %v60 = vpop.permute.xlu0 %59
    %vm61 = vcmp.eq.s32.totalorder %v57, %v54
    %vm62 = vcmp.eq.s32.totalorder %v60, %v54
    %v63 = vsel %vm61, 1, 0
    %v64 = vsel %vm62, 1, 0
    %v65 = vcvt.s32.f32 %v63
    %v66 = vcvt.s32.f32 %v64
    %vm67 = vcmask 130048
    %v69 = vsel %vm67, %v65, 0
    %v72 = vsel %vm67, %v66, 0
    %74 = vmatprep.subr.mxu0 0.0
    %v75 = vand.u32 %v49, 4294901760
    %76 = vmatpush1.msra.mxu0 %v75
    %77 = vmatprep.subr.mxu0 0.0
    %v78 = vand.u32 %v50, 4294901760
    %79 = vmatpush1.msra.mxu0 %v78
    %80 = vmatprep.subr.mxu0 0.0
    %81 = vmatpush1.msra.mxu0 0.0
    %82 = vmatprep.subr.mxu0 0.0
    %83 = vmatpush1.msra.mxu0 0.0
    %84 = vmatprep.subr.mxu0 0.0
    %85 = vmatpush1.msra.mxu0 0.0
    %86 = vmatprep.subr.mxu0 0.0
    %87 = vmatpush1.msra.mxu0 0.0
    %88 = vmatprep.subr.mxu0 0.0
    %89 = vmatpush1.msra.mxu0 0.0
    %90 = vmatprep.subr.mxu0 0.0
    %91 = vmatpush1.msra.mxu0 0.0
    %92 = vmatprep.subr.mxu0 0.0
    %93 = vmatpush1.msra.mxu0 0.0
    %94 = vmatprep.subr.mxu0 0.0
    %95 = vmatpush1.msra.mxu0 0.0
    %96 = vmatprep.subr.mxu0 0.0
    %97 = vmatpush1.msra.mxu0 0.0
    %98 = vmatprep.subr.mxu0 0.0
    %99 = vmatpush1.msra.mxu0 0.0
    %100 = vmatprep.subr.mxu0 0.0
    %101 = vmatpush1.msra.mxu0 0.0
    %102 = vmatprep.subr.mxu0 0.0
    %103 = vmatpush1.msra.mxu0 0.0
    %104 = vmatprep.subr.mxu0 0.0
    %105 = vmatpush1.msra.mxu0 0.0
    %106 = vmatprep.subr.mxu0 0.0
    %107 = vmatpush1.msra.mxu0 0.0
    %108 = vmatprep.subr.mxu0 0.0
    %109 = vmatpush1.msra.mxu0 0.0
    %110 = vmatprep.subr.mxu0 0.0
    %111 = vmatpush1.msra.mxu0 0.0
    %112 = vmatprep.subr.mxu0 0.0
    %113 = vmatpush1.msra.mxu0 0.0
    %114 = vmatprep.subr.mxu0 0.0
    %115 = vmatpush1.msra.mxu0 0.0
    %116 = vmatprep.subr.mxu0 0.0
    %117 = vmatpush1.msra.mxu0 0.0
    %118 = vmatprep.subr.mxu0 0.0
    %119 = vmatpush1.msra.mxu0 0.0
    %120 = vmatprep.subr.mxu0 0.0
    %121 = vmatpush1.msra.mxu0 0.0
    %122 = vmatprep.subr.mxu0 0.0
    %123 = vmatpush1.msra.mxu0 0.0
    %124 = vmatprep.subr.mxu0 0.0
    %125 = vmatpush1.msra.mxu0 0.0
    %126 = vmatprep.subr.mxu0 0.0
    %127 = vmatpush1.msra.mxu0 0.0
    %128 = vmatprep.subr.mxu0 0.0
    %129 = vmatpush1.msra.mxu0 0.0
    %130 = vmatprep.subr.mxu0 0.0
    %131 = vmatpush1.msra.mxu0 0.0
    %132 = vmatprep.subr.mxu0 0.0
    %133 = vmatpush1.msra.mxu0 0.0
    %134 = vmatprep.subr.mxu0 0.0
    %135 = vmatpush1.msra.mxu0 0.0
    %136 = vmatprep.subr.mxu0 0.0
    %137 = vmatpush1.msra.mxu0 0.0
    %138 = vmatprep.subr.mxu0 0.0
    %139 = vmatpush1.msra.mxu0 0.0
    %140 = vmatprep.mubr.f32.mxu0 0.0
    %v141 = vand.u32 %v69, 4294901760
    %v142 = vsub.f32 %v69, %v141
    %v143 = vand.u32 %v142, 4294901760
    %v144 = vsub.f32 %v142, %v143
    %v145 = vand.u32 %v144, 4294901760
    %146 = vmatmul.mubr.f32.gmra.mrb[0].mxu0 %v145
    %v147 = vpop.f32.mrb[0].mxu0
    %v148 = vadd.f32 0.0, %v147
    %v149 = vpop.f32.mrb[0].mxu0
    %150 = vmatprep.mubr.f32.mxu0 0.0
    %v151 = vand.u32 %v72, 4294901760
    %v152 = vsub.f32 %v72, %v151
    %v153 = vand.u32 %v152, 4294901760
    %v154 = vsub.f32 %v152, %v153
    %v155 = vand.u32 %v154, 4294901760
    %156 = vmatmul.mubr.f32.gmra.mrb[0].mxu0 %v155
    %v157 = vpop.f32.mrb[0].mxu0
    %v158 = vadd.f32 0.0, %v157
    %v159 = vpop.f32.mrb[0].mxu0
    %160 = vdwg.mxu0
    %161 = vmatprep.subr.mxu0 0.0
    %v162 = vand.u32 %v49, 4294901760
    %v163 = vsub.f32 %v49, %v162
    %v164 = vand.u32 %v163, 4294901760
    %v165 = vsub.f32 %v163, %v164
    %v166 = vand.u32 %v165, 4294901760
    %167 = vmatpush1.msra.mxu0 %v166
    %168 = vmatprep.subr.mxu0 0.0
    %v169 = vand.u32 %v50, 4294901760
    %v170 = vsub.f32 %v50, %v169
    %v171 = vand.u32 %v170, 4294901760
    %v172 = vsub.f32 %v170, %v171
    %v173 = vand.u32 %v172, 4294901760
    %174 = vmatpush1.msra.mxu0 %v173
    %175 = vmatprep.subr.mxu0 0.0
    %176 = vmatpush1.msra.mxu0 0.0
    %177 = vmatprep.subr.mxu0 0.0
    %178 = vmatpush1.msra.mxu0 0.0
    %179 = vmatprep.subr.mxu0 0.0
    %180 = vmatpush1.msra.mxu0 0.0
    %181 = vmatprep.subr.mxu0 0.0
    %182 = vmatpush1.msra.mxu0 0.0
    %183 = vmatprep.subr.mxu0 0.0
    %184 = vmatpush1.msra.mxu0 0.0
    %185 = vmatprep.subr.mxu0 0.0
    %186 = vmatpush1.msra.mxu0 0.0
    %187 = vmatprep.subr.mxu0 0.0
    %188 = vmatpush1.msra.mxu0 0.0
    %189 = vmatprep.subr.mxu0 0.0
    %190 = vmatpush1.msra.mxu0 0.0
    %191 = vmatprep.subr.mxu0 0.0
    %192 = vmatpush1.msra.mxu0 0.0
    %193 = vmatprep.subr.mxu0 0.0
    %194 = vmatpush1.msra.mxu0 0.0
    %195 = vmatprep.subr.mxu0 0.0
    %196 = vmatpush1.msra.mxu0 0.0
    %197 = vmatprep.subr.mxu0 0.0
    %198 = vmatpush1.msra.mxu0 0.0
    %199 = vmatprep.subr.mxu0 0.0
    %200 = vmatpush1.msra.mxu0 0.0
    %201 = vmatprep.subr.mxu0 0.0
    %202 = vmatpush1.msra.mxu0 0.0
    %203 = vmatprep.subr.mxu0 0.0
    %204 = vmatpush1.msra.mxu0 0.0
    %205 = vmatprep.subr.mxu0 0.0
    %206 = vmatpush1.msra.mxu0 0.0
    %207 = vmatprep.subr.mxu0 0.0
    %208 = vmatpush1.msra.mxu0 0.0
    %209 = vmatprep.subr.mxu0 0.0
    %210 = vmatpush1.msra.mxu0 0.0
    %211 = vmatprep.subr.mxu0 0.0
    %212 = vmatpush1.msra.mxu0 0.0
    %213 = vmatprep.subr.mxu0 0.0
    %214 = vmatpush1.msra.mxu0 0.0
    %215 = vmatprep.subr.mxu0 0.0
    %216 = vmatpush1.msra.mxu0 0.0
    %217 = vmatprep.subr.mxu0 0.0
    %218 = vmatpush1.msra.mxu0 0.0
    %219 = vmatprep.subr.mxu0 0.0
    %220 = vmatpush1.msra.mxu0 0.0
    %221 = vmatprep.subr.mxu0 0.0
    %222 = vmatpush1.msra.mxu0 0.0
    %223 = vmatprep.subr.mxu0 0.0
    %224 = vmatpush1.msra.mxu0 0.0
    %225 = vmatprep.subr.mxu0 0.0
    %226 = vmatpush1.msra.mxu0 0.0
    %227 = vmatprep.subr.mxu0 0.0
    %228 = vmatpush1.msra.mxu0 0.0
    %229 = vmatprep.subr.mxu0 0.0
    %230 = vmatpush1.msra.mxu0 0.0
    %231 = vmatprep.subr.mxu0 0.0
    %232 = vmatpush1.msra.mxu0 0.0
    %233 = vmatprep.subr.mxu0 0.0
    %234 = vmatpush1.msra.mxu0 0.0
    %235 = vmatprep.mubr.f32.mxu0 0.0
    %v236 = vand.u32 %v69, 4294901760
    %237 = vmatmul.mubr.f32.gmra.mrb[0].mxu0 %v236
    %v238 = vpop.f32.mrb[0].mxu0
    %v239 = vadd.f32 %v148, %v238
    %v240 = vpop.f32.mrb[0].mxu0
    %241 = vmatprep.mubr.f32.mxu0 0.0
    %v242 = vand.u32 %v72, 4294901760
    %243 = vmatmul.mubr.f32.gmra.mrb[0].mxu0 %v242
    %v244 = vpop.f32.mrb[0].mxu0
    %v245 = vadd.f32 %v158, %v244
    %v246 = vpop.f32.mrb[0].mxu0
    %247 = vdwg.mxu0
    %248 = vmatprep.subr.mxu0 0.0
    %v249 = vand.u32 %v49, 4294901760
    %v250 = vsub.f32 %v49, %v249
    %251 = vmatpush1.msra.mxu0 %v250
    %252 = vmatprep.subr.mxu0 0.0
    %v253 = vand.u32 %v50, 4294901760
    %v254 = vsub.f32 %v50, %v253
    %255 = vmatpush1.msra.mxu0 %v254
    %256 = vmatprep.subr.mxu0 0.0
    %257 = vmatpush1.msra.mxu0 0.0
    %258 = vmatprep.subr.mxu0 0.0
    %259 = vmatpush1.msra.mxu0 0.0
    %260 = vmatprep.subr.mxu0 0.0
    %261 = vmatpush1.msra.mxu0 0.0
    %262 = vmatprep.subr.mxu0 0.0
    %263 = vmatpush1.msra.mxu0 0.0
    %264 = vmatprep.subr.mxu0 0.0
    %265 = vmatpush1.msra.mxu0 0.0
    %266 = vmatprep.subr.mxu0 0.0
    %267 = vmatpush1.msra.mxu0 0.0
    %268 = vmatprep.subr.mxu0 0.0
    %269 = vmatpush1.msra.mxu0 0.0
    %270 = vmatprep.subr.mxu0 0.0
    %271 = vmatpush1.msra.mxu0 0.0
    %272 = vmatprep.subr.mxu0 0.0
    %273 = vmatpush1.msra.mxu0 0.0
    %274 = vmatprep.subr.mxu0 0.0
    %275 = vmatpush1.msra.mxu0 0.0
    %276 = vmatprep.subr.mxu0 0.0
    %277 = vmatpush1.msra.mxu0 0.0
    %278 = vmatprep.subr.mxu0 0.0
    %279 = vmatpush1.msra.mxu0 0.0
    %280 = vmatprep.subr.mxu0 0.0
    %281 = vmatpush1.msra.mxu0 0.0
    %282 = vmatprep.subr.mxu0 0.0
    %283 = vmatpush1.msra.mxu0 0.0
    %284 = vmatprep.subr.mxu0 0.0
    %285 = vmatpush1.msra.mxu0 0.0
    %286 = vmatprep.subr.mxu0 0.0
    %287 = vmatpush1.msra.mxu0 0.0
    %288 = vmatprep.subr.mxu0 0.0
    %289 = vmatpush1.msra.mxu0 0.0
    %290 = vmatprep.subr.mxu0 0.0
    %291 = vmatpush1.msra.mxu0 0.0
    %292 = vmatprep.subr.mxu0 0.0
    %293 = vmatpush1.msra.mxu0 0.0
    %294 = vmatprep.subr.mxu0 0.0
    %295 = vmatpush1.msra.mxu0 0.0
    %296 = vmatprep.subr.mxu0 0.0
    %297 = vmatpush1.msra.mxu0 0.0
    %298 = vmatprep.subr.mxu0 0.0
    %299 = vmatpush1.msra.mxu0 0.0
    %300 = vmatprep.subr.mxu0 0.0
    %301 = vmatpush1.msra.mxu0 0.0
    %302 = vmatprep.subr.mxu0 0.0
    %303 = vmatpush1.msra.mxu0 0.0
    %304 = vmatprep.subr.mxu0 0.0
    %305 = vmatpush1.msra.mxu0 0.0
    %306 = vmatprep.subr.mxu0 0.0
    %307 = vmatpush1.msra.mxu0 0.0
    %308 = vmatprep.subr.mxu0 0.0
    %309 = vmatpush1.msra.mxu0 0.0
    %310 = vmatprep.subr.mxu0 0.0
    %311 = vmatpush1.msra.mxu0 0.0
    %312 = vmatprep.subr.mxu0 0.0
    %313 = vmatpush1.msra.mxu0 0.0
    %314 = vmatprep.subr.mxu0 0.0
    %315 = vmatpush1.msra.mxu0 0.0
    %316 = vmatprep.mubr.f32.mxu0 0.0
    %v317 = vand.u32 %v69, 4294901760
    %v318 = vsub.f32 %v69, %v317
    %319 = vmatmul.mubr.f32.gmra.mrb[0].mxu0 %v318
    %v320 = vpop.f32.mrb[0].mxu0
    %v321 = vadd.f32 %v239, %v320
    %v322 = vpop.f32.mrb[0].mxu0
    %323 = vmatprep.mubr.f32.mxu0 0.0
    %v324 = vand.u32 %v72, 4294901760
    %v325 = vsub.f32 %v72, %v324
    %326 = vmatmul.mubr.f32.gmra.mrb[0].mxu0 %v325
    %v327 = vpop.f32.mrb[0].mxu0
    %v328 = vadd.f32 %v245, %v327
    %v329 = vpop.f32.mrb[0].mxu0
    %330 = vdwg.mxu0
    %331 = vmatprep.subr.mxu0 0.0
    %v332 = vand.u32 %v49, 4294901760
    %333 = vmatpush1.msra.mxu0 %v332
    %334 = vmatprep.subr.mxu0 0.0
    %v335 = vand.u32 %v50, 4294901760
    %336 = vmatpush1.msra.mxu0 %v335
    %337 = vmatprep.subr.mxu0 0.0
    %338 = vmatpush1.msra.mxu0 0.0
    %339 = vmatprep.subr.mxu0 0.0
    %340 = vmatpush1.msra.mxu0 0.0
    %341 = vmatprep.subr.mxu0 0.0
    %342 = vmatpush1.msra.mxu0 0.0
    %343 = vmatprep.subr.mxu0 0.0
    %344 = vmatpush1.msra.mxu0 0.0
    %345 = vmatprep.subr.mxu0 0.0
    %346 = vmatpush1.msra.mxu0 0.0
    %347 = vmatprep.subr.mxu0 0.0
    %348 = vmatpush1.msra.mxu0 0.0
    %349 = vmatprep.subr.mxu0 0.0
    %350 = vmatpush1.msra.mxu0 0.0
    %351 = vmatprep.subr.mxu0 0.0
    %352 = vmatpush1.msra.mxu0 0.0
    %353 = vmatprep.subr.mxu0 0.0
    %354 = vmatpush1.msra.mxu0 0.0
    %355 = vmatprep.subr.mxu0 0.0
    %356 = vmatpush1.msra.mxu0 0.0
    %357 = vmatprep.subr.mxu0 0.0
    %358 = vmatpush1.msra.mxu0 0.0
    %359 = vmatprep.subr.mxu0 0.0
    %360 = vmatpush1.msra.mxu0 0.0
    %361 = vmatprep.subr.mxu0 0.0
    %362 = vmatpush1.msra.mxu0 0.0
    %363 = vmatprep.subr.mxu0 0.0
    %364 = vmatpush1.msra.mxu0 0.0
    %365 = vmatprep.subr.mxu0 0.0
    %366 = vmatpush1.msra.mxu0 0.0
    %367 = vmatprep.subr.mxu0 0.0
    %368 = vmatpush1.msra.mxu0 0.0
    %369 = vmatprep.subr.mxu0 0.0
    %370 = vmatpush1.msra.mxu0 0.0
    %371 = vmatprep.subr.mxu0 0.0
    %372 = vmatpush1.msra.mxu0 0.0
    %373 = vmatprep.subr.mxu0 0.0
    %374 = vmatpush1.msra.mxu0 0.0
    %375 = vmatprep.subr.mxu0 0.0
    %376 = vmatpush1.msra.mxu0 0.0
    %377 = vmatprep.subr.mxu0 0.0
    %378 = vmatpush1.msra.mxu0 0.0
    %379 = vmatprep.subr.mxu0 0.0
    %380 = vmatpush1.msra.mxu0 0.0
    %381 = vmatprep.subr.mxu0 0.0
    %382 = vmatpush1.msra.mxu0 0.0
    %383 = vmatprep.subr.mxu0 0.0
    %384 = vmatpush1.msra.mxu0 0.0
    %385 = vmatprep.subr.mxu0 0.0
    %386 = vmatpush1.msra.mxu0 0.0
    %387 = vmatprep.subr.mxu0 0.0
    %388 = vmatpush1.msra.mxu0 0.0
    %389 = vmatprep.subr.mxu0 0.0
    %390 = vmatpush1.msra.mxu0 0.0
    %391 = vmatprep.subr.mxu0 0.0
    %392 = vmatpush1.msra.mxu0 0.0
    %393 = vmatprep.subr.mxu0 0.0
    %394 = vmatpush1.msra.mxu0 0.0
    %395 = vmatprep.subr.mxu0 0.0
    %396 = vmatpush1.msra.mxu0 0.0
    %397 = vmatprep.mubr.f32.mxu0 0.0
    %v398 = vand.u32 %v69, 4294901760
    %v399 = vsub.f32 %v69, %v398
    %v400 = vand.u32 %v399, 4294901760
    %401 = vmatmul.mubr.f32.gmra.mrb[0].mxu0 %v400
    %v402 = vpop.f32.mrb[0].mxu0
    %v403 = vadd.f32 %v321, %v402
    %v404 = vpop.f32.mrb[0].mxu0
    %405 = vmatprep.mubr.f32.mxu0 0.0
    %v406 = vand.u32 %v72, 4294901760
    %v407 = vsub.f32 %v72, %v406
    %v408 = vand.u32 %v407, 4294901760
    %409 = vmatmul.mubr.f32.gmra.mrb[0].mxu0 %v408
    %v410 = vpop.f32.mrb[0].mxu0
    %v411 = vadd.f32 %v328, %v410
    %v412 = vpop.f32.mrb[0].mxu0
    %413 = vdwg.mxu0
    %414 = vmatprep.subr.mxu0 0.0
    %v415 = vand.u32 %v49, 4294901760
    %v416 = vsub.f32 %v49, %v415
    %v417 = vand.u32 %v416, 4294901760
    %418 = vmatpush1.msra.mxu0 %v417
    %419 = vmatprep.subr.mxu0 0.0
    %v420 = vand.u32 %v50, 4294901760
    %v421 = vsub.f32 %v50, %v420
    %v422 = vand.u32 %v421, 4294901760
    %423 = vmatpush1.msra.mxu0 %v422
    %424 = vmatprep.subr.mxu0 0.0
    %425 = vmatpush1.msra.mxu0 0.0
    %426 = vmatprep.subr.mxu0 0.0
    %427 = vmatpush1.msra.mxu0 0.0
    %428 = vmatprep.subr.mxu0 0.0
    %429 = vmatpush1.msra.mxu0 0.0
    %430 = vmatprep.subr.mxu0 0.0
    %431 = vmatpush1.msra.mxu0 0.0
    %432 = vmatprep.subr.mxu0 0.0
    %433 = vmatpush1.msra.mxu0 0.0
    %434 = vmatprep.subr.mxu0 0.0
    %435 = vmatpush1.msra.mxu0 0.0
    %436 = vmatprep.subr.mxu0 0.0
    %437 = vmatpush1.msra.mxu0 0.0
    %438 = vmatprep.subr.mxu0 0.0
    %439 = vmatpush1.msra.mxu0 0.0
    %440 = vmatprep.subr.mxu0 0.0
    %441 = vmatpush1.msra.mxu0 0.0
    %442 = vmatprep.subr.mxu0 0.0
    %443 = vmatpush1.msra.mxu0 0.0
    %444 = vmatprep.subr.mxu0 0.0
    %445 = vmatpush1.msra.mxu0 0.0
    %446 = vmatprep.subr.mxu0 0.0
    %447 = vmatpush1.msra.mxu0 0.0
    %448 = vmatprep.subr.mxu0 0.0
    %449 = vmatpush1.msra.mxu0 0.0
    %450 = vmatprep.subr.mxu0 0.0
    %451 = vmatpush1.msra.mxu0 0.0
    %452 = vmatprep.subr.mxu0 0.0
    %453 = vmatpush1.msra.mxu0 0.0
    %454 = vmatprep.subr.mxu0 0.0
    %455 = vmatpush1.msra.mxu0 0.0
    %456 = vmatprep.subr.mxu0 0.0
    %457 = vmatpush1.msra.mxu0 0.0
    %458 = vmatprep.subr.mxu0 0.0
    %459 = vmatpush1.msra.mxu0 0.0
    %460 = vmatprep.subr.mxu0 0.0
    %461 = vmatpush1.msra.mxu0 0.0
    %462 = vmatprep.subr.mxu0 0.0
    %463 = vmatpush1.msra.mxu0 0.0
    %464 = vmatprep.subr.mxu0 0.0
    %465 = vmatpush1.msra.mxu0 0.0
    %466 = vmatprep.subr.mxu0 0.0
    %467 = vmatpush1.msra.mxu0 0.0
    %468 = vmatprep.subr.mxu0 0.0
    %469 = vmatpush1.msra.mxu0 0.0
    %470 = vmatprep.subr.mxu0 0.0
    %471 = vmatpush1.msra.mxu0 0.0
    %472 = vmatprep.subr.mxu0 0.0
    %473 = vmatpush1.msra.mxu0 0.0
    %474 = vmatprep.subr.mxu0 0.0
    %475 = vmatpush1.msra.mxu0 0.0
    %476 = vmatprep.subr.mxu0 0.0
    %477 = vmatpush1.msra.mxu0 0.0
    %478 = vmatprep.subr.mxu0 0.0
    %479 = vmatpush1.msra.mxu0 0.0
    %480 = vmatprep.subr.mxu0 0.0
    %481 = vmatpush1.msra.mxu0 0.0
    %482 = vmatprep.subr.mxu0 0.0
    %483 = vmatpush1.msra.mxu0 0.0
    %484 = vmatprep.mubr.f32.mxu0 0.0
    %v485 = vand.u32 %v69, 4294901760
    %486 = vmatmul.mubr.f32.gmra.mrb[0].mxu0 %v485
    %v487 = vpop.f32.mrb[0].mxu0
    %v488 = vadd.f32 %v403, %v487
    %v489 = vpop.f32.mrb[0].mxu0
    %490 = vmatprep.mubr.f32.mxu0 0.0
    %v491 = vand.u32 %v72, 4294901760
    %492 = vmatmul.mubr.f32.gmra.mrb[0].mxu0 %v491
    %v493 = vpop.f32.mrb[0].mxu0
    %v494 = vadd.f32 %v411, %v493
    %v495 = vpop.f32.mrb[0].mxu0
    %496 = vdwg.mxu0
    %497 = vmatprep.subr.mxu0 0.0
    %v498 = vand.u32 %v49, 4294901760
    %499 = vmatpush1.msra.mxu0 %v498
    %500 = vmatprep.subr.mxu0 0.0
    %v501 = vand.u32 %v50, 4294901760
    %502 = vmatpush1.msra.mxu0 %v501
    %503 = vmatprep.subr.mxu0 0.0
    %504 = vmatpush1.msra.mxu0 0.0
    %505 = vmatprep.subr.mxu0 0.0
    %506 = vmatpush1.msra.mxu0 0.0
    %507 = vmatprep.subr.mxu0 0.0
    %508 = vmatpush1.msra.mxu0 0.0
    %509 = vmatprep.subr.mxu0 0.0
    %510 = vmatpush1.msra.mxu0 0.0
    %511 = vmatprep.subr.mxu0 0.0
    %512 = vmatpush1.msra.mxu0 0.0
    %513 = vmatprep.subr.mxu0 0.0
    %514 = vmatpush1.msra.mxu0 0.0
    %515 = vmatprep.subr.mxu0 0.0
    %516 = vmatpush1.msra.mxu0 0.0
    %517 = vmatprep.subr.mxu0 0.0
    %518 = vmatpush1.msra.mxu0 0.0
    %519 = vmatprep.subr.mxu0 0.0
    %520 = vmatpush1.msra.mxu0 0.0
    %521 = vmatprep.subr.mxu0 0.0
    %522 = vmatpush1.msra.mxu0 0.0
    %523 = vmatprep.subr.mxu0 0.0
    %524 = vmatpush1.msra.mxu0 0.0
    %525 = vmatprep.subr.mxu0 0.0
    %526 = vmatpush1.msra.mxu0 0.0
    %527 = vmatprep.subr.mxu0 0.0
    %528 = vmatpush1.msra.mxu0 0.0
    %529 = vmatprep.subr.mxu0 0.0
    %530 = vmatpush1.msra.mxu0 0.0
    %531 = vmatprep.subr.mxu0 0.0
    %532 = vmatpush1.msra.mxu0 0.0
    %533 = vmatprep.subr.mxu0 0.0
    %534 = vmatpush1.msra.mxu0 0.0
    %535 = vmatprep.subr.mxu0 0.0
    %536 = vmatpush1.msra.mxu0 0.0
    %537 = vmatprep.subr.mxu0 0.0
    %538 = vmatpush1.msra.mxu0 0.0
    %539 = vmatprep.subr.mxu0 0.0
    %540 = vmatpush1.msra.mxu0 0.0
    %541 = vmatprep.subr.mxu0 0.0
    %542 = vmatpush1.msra.mxu0 0.0
    %543 = vmatprep.subr.mxu0 0.0
    %544 = vmatpush1.msra.mxu0 0.0
    %545 = vmatprep.subr.mxu0 0.0
    %546 = vmatpush1.msra.mxu0 0.0
    %547 = vmatprep.subr.mxu0 0.0
    %548 = vmatpush1.msra.mxu0 0.0
    %549 = vmatprep.subr.mxu0 0.0
    %550 = vmatpush1.msra.mxu0 0.0
    %551 = vmatprep.subr.mxu0 0.0
    %552 = vmatpush1.msra.mxu0 0.0
    %553 = vmatprep.subr.mxu0 0.0
    %554 = vmatpush1.msra.mxu0 0.0
    %555 = vmatprep.subr.mxu0 0.0
    %556 = vmatpush1.msra.mxu0 0.0
    %557 = vmatprep.subr.mxu0 0.0
    %558 = vmatpush1.msra.mxu0 0.0
    %559 = vmatprep.subr.mxu0 0.0
    %560 = vmatpush1.msra.mxu0 0.0
    %561 = vmatprep.subr.mxu0 0.0
    %562 = vmatpush1.msra.mxu0 0.0
    %563 = vmatprep.mubr.f32.mxu0 0.0
    %v564 = vand.u32 %v69, 4294901760
    %565 = vmatmul.mubr.f32.gmra.mrb[0].mxu0 %v564
    %v566 = vpop.f32.mrb[0].mxu0
    %v567 = vadd.f32 %v488, %v566
    %v568 = vpop.f32.mrb[0].mxu0
    %569 = vmatprep.mubr.f32.mxu0 0.0
    %v570 = vand.u32 %v72, 4294901760
    %571 = vmatmul.mubr.f32.gmra.mrb[0].mxu0 %v570
    %v572 = vpop.f32.mrb[0].mxu0
    %v573 = vadd.f32 %v494, %v572
    %v574 = vpop.f32.mrb[0].mxu0
    %575 = vdwg.mxu0
    %v576 = vmul.f32 %v45, %v567
    %v577 = vmul.f32 %v46, %v573
    %v578 = vmul.f32 %v576, %v47
    %v579 = vmul.f32 %v577, %v48
    %580 = vadd.xlane.f32.xlu0 %v578
    %v581 = vpop.xlane.xlu0 %580
    %582 = vadd.xlane.f32.xlu0 %v579
    %v583 = vpop.xlane.xlu0 %582
    %vm584 = vcmask 7168
    %585 = vst.msk [vmem:[%s4] sm:$0xff] %vm584, %v581
    %586 = vst.msk [vmem:[%s4 + $0x8] sm:$0xff] %vm584, %v583
    // Predicated region
    $region26: #{tpu_custom_call.1} parent=1 // pred_check
      _
    $region27: #{tpu_custom_call.1} parent=1 // pred_check_branch
      %588 = sbr.rel (0) target = $region29
    $region28: #{tpu_custom_call.1} parent=1 // pred_region
      _
    $region29: #{tpu_custom_call.1} parent=1 // pred_fallthru
      _
    // Predicated region
    $region30: #{tpu_custom_call.1} parent=1 // pred_check
      _
    $region31: #{tpu_custom_call.1} parent=1 // pred_check_branch
      %590 = sbr.rel (0) target = $region33
    $region32: #{tpu_custom_call.1} parent=1 // pred_region
      _
    $region33: #{tpu_custom_call.1} parent=1 // pred_fallthru
      _
    %591 = vsyncpa [#allocation3], 1
    %592 = vsyncpa [#allocation5], 1

</llo_original>
